<compile_context>
chip_gen: v7x
topology: tpu7x:2x2x1
jax: 0.10.0
libtpu: 0.0.40
codegen_flags: <defaults>
</compile_context>

<pallas_src>
import jax
import jax.numpy as jnp
from jax.experimental import pallas as pl
from jax.experimental.pallas import tpu as pltpu

MXU_DTYPE = jnp.bfloat16          # matmul-input dtype (accumulation is always f32)
LN_EPS = 1e-6
BN_EPS = 1e-5


# ------------------------------------------------------------------ generation-aware knobs

def _vmem_capacity_bytes():
    try:
        info = pltpu.get_tpu_info()
        for attr in ("vmem_capacity_bytes", "vmem_size_bytes", "vmem_bytes"):
            cap = getattr(info, attr, None)
            if cap:
                return int(cap)
    except Exception:
        pass
    return 64 * 1024 * 1024       # conservative (v7x-sized) fallback


_VMEM_CAP = _vmem_capacity_bytes()
if _VMEM_CAP > 96 * 1024 * 1024:          # v5e / v6e: 128 MiB VMEM per TensorCore
    VMEM_LIMIT = 96 * 1024 * 1024
    TM_PREF, TN_PREF, TK_PREF = 512, 256, 1024
else:                                      # v7x: 64 MiB VMEM per TensorCore
    VMEM_LIMIT = 44 * 1024 * 1024
    TM_PREF, TN_PREF, TK_PREF = 256, 256, 512


# ------------------------------------------------------------------ tiling helpers

def _round_up(x, m):
    return ((x + m - 1) // m) * m


def _pick_tile(dim, pref, align):
    """Largest tile <= pref that divides `dim` and is a multiple of `align`; else full dim."""
    if dim <= pref:
        return dim
    t = (pref // align) * align
    while t >= align:
        if dim % t == 0:
            return t
        t -= align
    return dim


def _row_tiling(M, pref):
    """(padded row count, row tile): keeps row tiles in the 128..pref sweet spot instead
    of one giant full-dim block or tiny 8-row tiles when M has no aligned divisor."""
    Mp = _round_up(M, 8)
    if Mp <= pref:
        return Mp, Mp
    t = _pick_tile(Mp, pref, 8)
    if t >= 128:
        return Mp, t
    Mp = _round_up(M, 128)
    return Mp, _pick_tile(Mp, pref, 128)


def _pad_rows(x, Mp):
    M = x.shape[0]
    if Mp == M:
        return x
    return jnp.pad(x, ((0, Mp - M),) + ((0, 0),) * (x.ndim - 1))


# ------------------------------------------------------------------ Pallas kernels

def matmul_bias_pallas(x, w, b):
    """x:(M,K) @ w:(K,N) bf16 + b:(N,) -> (M,N) f32. Tiled M/N/K grid, f32 accumulator."""
    M, K = x.shape
    N = w.shape[1]
    Mp, tm = _row_tiling(M, TM_PREF)
    tn = _pick_tile(N, TN_PREF, 128)
    tk = _pick_tile(K, TK_PREF, 128)
    xp = _pad_rows(x, Mp)
    grid = (Mp // tm, N // tn, K // tk)

    def kernel(x_ref, w_ref, b_ref, o_ref, acc_ref):
        @pl.when(pl.program_id(2) == 0)
        def _():
            acc_ref[...] = jnp.zeros_like(acc_ref)

        acc_ref[...] += jnp.dot(x_ref[...].astype(w_ref.dtype), w_ref[...],
                                preferred_element_type=jnp.float32)

        @pl.when(pl.program_id(2) == pl.num_programs(2) - 1)
        def _():
            o_ref[...] = acc_ref[...] + b_ref[...]

    out = pl.pallas_call(
        kernel,
        grid=grid,
        in_specs=[pl.BlockSpec((tm, tk), lambda i, j, k: (i, k)),
                  pl.BlockSpec((tk, tn), lambda i, j, k: (k, j)),
                  pl.BlockSpec((1, tn), lambda i, j, k: (0, j))],
        out_specs=pl.BlockSpec((tm, tn), lambda i, j, k: (i, j)),
        out_shape=jax.ShapeDtypeStruct((Mp, N), jnp.float32),
        scratch_shapes=[pltpu.VMEM((tm, tn), jnp.float32)],
        compiler_params=pltpu.CompilerParams(
            dimension_semantics=("parallel", "parallel", "arbitrary"),
            vmem_limit_bytes=VMEM_LIMIT),
        cost_estimate=pl.CostEstimate(
            flops=2 * Mp * N * K, transcendentals=0,
            bytes_accessed=int(xp.dtype.itemsize) * Mp * K * max(1, N // tn)
                           + 2 * K * N + 4 * Mp * N),
    )(xp, w, b.reshape(1, N))
    return out[:M]


def ln_linear_pallas(x, g, b_ln, w, bias, eps=LN_EPS):
    """Fused LayerNorm(last dim) + matmul: LN(x) @ w + bias.  The LN (two XLU reductions)
    and the bf16 cast are hoisted: computed once per row block into a carried bf16 VMEM
    scratch at j == 0 and reused for every N tile (N axis is "arbitrary")."""
    M, K = x.shape
    N = w.shape[1]
    Mp, tm = _row_tiling(M, TM_PREF)
    tn = _pick_tile(N, max(TN_PREF, 512), 128)
    xp = _pad_rows(x, Mp)
    grid = (Mp // tm, N // tn)

    def kernel(x_ref, g_ref, bl_ref, w_ref, b_ref, o_ref, h_sc):
        @pl.when(pl.program_id(1) == 0)
        def _():
            xv = x_ref[...]
            mu = jnp.mean(xv, axis=-1, keepdims=True)
            var = jnp.mean(jnp.square(xv - mu), axis=-1, keepdims=True)
            h = (xv - mu) * jax.lax.rsqrt(var + eps) * g_ref[...] + bl_ref[...]
            h_sc[...] = h.astype(MXU_DTYPE)

        o_ref[...] = jnp.dot(h_sc[...], w_ref[...],
                             preferred_element_type=jnp.float32) + b_ref[...]

    out = pl.pallas_call(
        kernel,
        grid=grid,
        in_specs=[pl.BlockSpec((tm, K), lambda i, j: (i, 0)),
                  pl.BlockSpec((1, K), lambda i, j: (0, 0)),
                  pl.BlockSpec((1, K), lambda i, j: (0, 0)),
                  pl.BlockSpec((K, tn), lambda i, j: (0, j)),
                  pl.BlockSpec((1, tn), lambda i, j: (0, j))],
        out_specs=pl.BlockSpec((tm, tn), lambda i, j: (i, j)),
        out_shape=jax.ShapeDtypeStruct((Mp, N), jnp.float32),
        scratch_shapes=[pltpu.VMEM((tm, K), MXU_DTYPE)],
        compiler_params=pltpu.CompilerParams(
            # N axis must be "arbitrary": the LN scratch is carried across its tiles.
            dimension_semantics=("parallel", "arbitrary"),
            vmem_limit_bytes=VMEM_LIMIT),
        cost_estimate=pl.CostEstimate(
            flops=2 * Mp * N * K, transcendentals=0,
            bytes_accessed=4 * (Mp * K + Mp * N) + 2 * K * N),
    )(xp, g.reshape(1, K), b_ln.reshape(1, K), w, bias.reshape(1, N))
    return out[:M]


def _erf_poly(z):
    # Abramowitz & Stegun 7.1.26 (|err| < 1.5e-7 ~ f32 precision): exact-erf GELU built only
    # from Mosaic-supported primitives (exp / mul / add / select).  Kept in f32 so results
    # match the PyTorch reference on every TPU generation (v5e has no bf16 VPU anyway).
    az = jnp.abs(z)
    t = 1.0 / (1.0 + 0.3275911 * az)
    poly = t * (0.254829592 + t * (-0.284496736 + t * (1.421413741
             + t * (-1.453152027 + t * 1.061405429))))
    e = 1.0 - poly * jnp.exp(-az * az)
    return jnp.where(z < 0, -e, e)


def _gelu_exact(x):
    # PyTorch nn.GELU default = exact erf formulation.
    return 0.5 * x * (1.0 + _erf_poly(x * 0.7071067811865476))


def mlp_residual_pallas(x, g, b_ln, w1, b1, w2, b2, final_g=None, final_b=None, eps=LN_EPS):
    """Fused: y = x + fc2(GELU(fc1(LN(x)))).  If final_g/final_b are given, a LayerNorm
    epilogue is fused onto y before the store (the trailing `norm` of the b1/b2 branches),
    saving a full HBM round trip of the branch activation."""
    M, D = x.shape
    H = w1.shape[1]
    fuse_ln = final_g is not None
    if not fuse_ln:
        final_g = jnp.ones((D,), jnp.float32)
        final_b = jnp.zeros((D,), jnp.float32)
    Mp, tm = _row_tiling(M, TM_PREF)
    xp = _pad_rows(x, Mp)
    grid = (Mp // tm,)

    def kernel(x_ref, g_ref, bl_ref, w1_ref, b1_ref, w2_ref, b2_ref, fg_ref, fb_ref, o_ref):
        xv = x_ref[...]
        mu = jnp.mean(xv, axis=-1, keepdims=True)
        var = jnp.mean(jnp.square(xv - mu), axis=-1, keepdims=True)
        h = (xv - mu) * jax.lax.rsqrt(var + eps) * g_ref[...] + bl_ref[...]
        h = jnp.dot(h.astype(w1_ref.dtype), w1_ref[...],
                    preferred_element_type=jnp.float32) + b1_ref[...]
        h = _gelu_exact(h)
        h = jnp.dot(h.astype(w2_ref.dtype), w2_ref[...],
                    preferred_element_type=jnp.float32) + b2_ref[...]
        y = xv + h
        if fuse_ln:
            mu2 = jnp.mean(y, axis=-1, keepdims=True)
            var2 = jnp.mean(jnp.square(y - mu2), axis=-1, keepdims=True)
            y = (y - mu2) * jax.lax.rsqrt(var2 + eps) * fg_ref[...] + fb_ref[...]
        o_ref[...] = y

    # TODO(synk): on v7x, single-buffer the constant-index weight blocks
    # (pipeline_mode=pl.Buffered(1)) once that path is verified on the deployed jax build.
    out = pl.pallas_call(
        kernel,
        grid=grid,
        in_specs=[pl.BlockSpec((tm, D), lambda i: (i, 0)),
                  pl.BlockSpec((1, D), lambda i: (0, 0)),
                  pl.BlockSpec((1, D), lambda i: (0, 0)),
                  pl.BlockSpec((D, H), lambda i: (0, 0)),
                  pl.BlockSpec((1, H), lambda i: (0, 0)),
                  pl.BlockSpec((H, D), lambda i: (0, 0)),
                  pl.BlockSpec((1, D), lambda i: (0, 0)),
                  pl.BlockSpec((1, D), lambda i: (0, 0)),
                  pl.BlockSpec((1, D), lambda i: (0, 0))],
        out_specs=pl.BlockSpec((tm, D), lambda i: (i, 0)),
        out_shape=jax.ShapeDtypeStruct((Mp, D), jnp.float32),
        compiler_params=pltpu.CompilerParams(
            dimension_semantics=("parallel",),
            vmem_limit_bytes=VMEM_LIMIT),
        cost_estimate=pl.CostEstimate(
            flops=4 * Mp * D * H, transcendentals=Mp * H,
            bytes_accessed=8 * Mp * D + 4 * D * H),
    )(xp, g.reshape(1, D), b_ln.reshape(1, D), w1, b1.reshape(1, H),
      w2, b2.reshape(1, D), final_g.reshape(1, D), final_b.reshape(1, D))
    return out[:M]


def attn_residual_pallas(x, qkv, proj_w, proj_b, heads):
    """Fused MHSA + out-projection + residual, gridded over batch; all heads per step.
       x:(B,S,D) f32, qkv:(B,S,3D) f32, proj_w:(D,D) bf16.
       Sequence is padded to a multiple of 128 (lane-dense score matrix / PV contraction);
       padded keys are masked before softmax, padded rows are sliced off after the call.
       Per-head q/k/v are static ref slices; per-head PV results land in a (Sp,D) VMEM
       scratch column slice (no whole-QKV value load, no in-value concat)."""
    B, S, D = x.shape
    hd = D // heads
    scale = hd ** -0.5
    Sp = _round_up(S, 128)
    need_mask = Sp != S
    if need_mask:
        x_p = jnp.pad(x, ((0, 0), (0, Sp - S), (0, 0)))
        qkv_p = jnp.pad(qkv, ((0, 0), (0, Sp - S), (0, 0)))
    else:
        x_p, qkv_p = x, qkv

    def kernel(x_ref, qkv_ref, w_ref, b_ref, o_ref, attn_sc):
        if need_mask:
            key_valid = jax.lax.broadcasted_iota(jnp.int32, (1, Sp), 1) < S
        for h in range(heads):                          # static unroll over heads
            q = qkv_ref[0, :, pl.ds(h * hd, hd)].astype(MXU_DTYPE)
            k = qkv_ref[0, :, pl.ds(D + h * hd, hd)].astype(MXU_DTYPE)
            v = qkv_ref[0, :, pl.ds(2 * D + h * hd, hd)].astype(MXU_DTYPE)
            s = jax.lax.dot_general(q, k, (((1,), (1,)), ((), ())),
                                    preferred_element_type=jnp.float32) * scale
            if need_mask:
                s = jnp.where(key_valid, s, -1e30)      # padded keys get ~zero weight
            s = s - jnp.max(s, axis=-1, keepdims=True)
            p = jnp.exp(s)
            p = p * pl.reciprocal(jnp.sum(p, axis=-1, keepdims=True), approx=True)
            attn_sc[:, h * hd:(h + 1) * hd] = jnp.dot(
                p.astype(MXU_DTYPE), v, preferred_element_type=jnp.float32)
        proj = jnp.dot(attn_sc[...].astype(w_ref.dtype), w_ref[...],
                       preferred_element_type=jnp.float32) + b_ref[...]
        o_ref[0] = x_ref[0] + proj

    flops = B * (heads * 4 * Sp * Sp * hd + 2 * Sp * D * D)
    out = pl.pallas_call(
        kernel,
        grid=(B,),
        in_specs=[pl.BlockSpec((1, Sp, D), lambda b: (b, 0, 0)),
                  pl.BlockSpec((1, Sp, 3 * D), lambda b: (b, 0, 0)),
                  pl.BlockSpec((D, D), lambda b: (0, 0)),
                  pl.BlockSpec((1, D), lambda b: (0, 0))],
        out_specs=pl.BlockSpec((1, Sp, D), lambda b: (b, 0, 0)),
        out_shape=jax.ShapeDtypeStruct((B, Sp, D), jnp.float32),
        scratch_shapes=[pltpu.VMEM((Sp, D), jnp.float32)],
        compiler_params=pltpu.CompilerParams(
            dimension_semantics=("parallel",),
            vmem_limit_bytes=VMEM_LIMIT),
        cost_estimate=pl.CostEstimate(
            flops=flops, transcendentals=B * heads * Sp * Sp,
            bytes_accessed=4 * B * Sp * (5 * D) + 2 * D * D),
    )(x_p, qkv_p, proj_w, proj_b.reshape(1, D))
    return out[:, :S] if need_mask else out


def affine_grouped_pallas(x, scale, shift):
    """Per-group row-wise affine: out[g] = x[g] * scale[g] + shift[g] (the 5 eval-mode
    BatchNorm1d bottlenecks).  scale/shift stay (G,1,D) — selected by index_map, never
    broadcast to (G*B, D) in HBM."""
    G, B, D = x.shape

    def kernel(x_ref, s_ref, t_ref, o_ref):
        o_ref[0] = x_ref[0] * s_ref[0] + t_ref[0]

    return pl.pallas_call(
        kernel,
        grid=(G,),
        in_specs=[pl.BlockSpec((1, B, D), lambda g: (g, 0, 0)),
                  pl.BlockSpec((1, 1, D), lambda g: (g, 0, 0)),
                  pl.BlockSpec((1, 1, D), lambda g: (g, 0, 0))],
        out_specs=pl.BlockSpec((1, B, D), lambda g: (g, 0, 0)),
        out_shape=jax.ShapeDtypeStruct((G, B, D), jnp.float32),
        compiler_params=pltpu.CompilerParams(dimension_semantics=("parallel",)),
    )(x, scale, shift)


def classifier_batched_pallas(x5, w5):
    """Five bias-free classifier heads in one call: out[g] = x5[g] @ w5[g]. w5 bf16.
    num_classes padded to a multiple of 128 (lane-dense stores), batch to 8; sliced back."""
    G, B, D = x5.shape
    C = w5.shape[2]
    Bp = _round_up(B, 8)
    Cp = _round_up(C, 128)
    if Bp != B:
        x5 = jnp.pad(x5, ((0, 0), (0, Bp - B), (0, 0)))
    if Cp != C:
        w5 = jnp.pad(w5, ((0, 0), (0, 0), (0, Cp - C)))

    def kernel(x_ref, w_ref, o_ref):
        o_ref[0] = jnp.dot(x_ref[0].astype(w_ref.dtype), w_ref[0],
                           preferred_element_type=jnp.float32)

    out = pl.pallas_call(
        kernel,
        grid=(G,),
        in_specs=[pl.BlockSpec((1, Bp, D), lambda g: (g, 0, 0)),
                  pl.BlockSpec((1, D, Cp), lambda g: (g, 0, 0))],
        out_specs=pl.BlockSpec((1, Bp, Cp), lambda g: (g, 0, 0)),
        out_shape=jax.ShapeDtypeStruct((G, Bp, Cp), jnp.float32),
        compiler_params=pltpu.CompilerParams(
            dimension_semantics=("parallel",),
            vmem_limit_bytes=VMEM_LIMIT),
        cost_estimate=pl.CostEstimate(flops=2 * G * Bp * D * Cp, transcendentals=0,
                                      bytes_accessed=4 * G * Bp * (D + Cp) + 2 * G * D * Cp),
    )(x5, w5)
    return out[:, :B, :C]


# ------------------------------------------------------------------ model pieces (glue + kernels)

def patch_embed(x_img, w_mat, b_conv, patch):
    """Conv2d(C, D, kernel=stride=patch) on NCHW == im2col + tiled Pallas matmul.
    Patches are cast to bf16 in the wrapper (halves re-fetched activation traffic)."""
    B, C, H, W = x_img.shape
    D = w_mat.shape[1]
    Hp, Wp = H // patch, W // patch
    patches = x_img.reshape(B, C, Hp, patch, Wp, patch)
    patches = patches.transpose(0, 2, 4, 1, 3, 5).reshape(B * Hp * Wp, C * patch * patch)
    out = matmul_bias_pallas(patches.astype(MXU_DTYPE), w_mat, b_conv)
    return out.reshape(B, Hp * Wp, D)


def block_forward(x, p, heads, final_g=None, final_b=None):
    """timm-style ViT block (eval): x + proj(attn(LN1(x))); x + mlp(LN2(x)).
    If final_g/final_b are given, the trailing LayerNorm (b1/b2 branch norm) is fused
    into the MLP kernel's epilogue."""
    B, S, D = x.shape
    qkv = ln_linear_pallas(x.reshape(B * S, D), p['ln1_g'], p['ln1_b'],
                           p['qkv_w'], p['qkv_b']).reshape(B, S, 3 * D)
    x = attn_residual_pallas(x, qkv, p['proj_w'], p['proj_b'], heads)
    x = mlp_residual_pallas(x.reshape(B * S, D), p['ln2_g'], p['ln2_b'],
                            p['fc1_w'], p['fc1_b'], p['fc2_w'], p['fc2_b'],
                            final_g=final_g, final_b=final_b).reshape(B, S, D)
    return x


def b_branch(x, blk, norm_g, norm_b, heads):
    """nn.Sequential(copy.deepcopy(block), copy.deepcopy(layer_norm)) with the final LN fused."""
    return block_forward(x, blk, heads, final_g=norm_g, final_b=norm_b)


def shuffle_unit(features, shift, group, begin=1):
    """Matches PyTorch shuffle_unit (static shapes chosen divisible, so no except-branch)."""
    B = features.shape[0]
    dim = features.shape[-1]
    feature_random = jnp.concatenate(
        [features[:, begin - 1 + shift:], features[:, begin:begin - 1 + shift]], axis=1)
    x = feature_random.reshape(B, group, -1, dim)
    x = jnp.swapaxes(x, 1, 2).reshape(B, -1, dim)
    return x


def bottlenecks_bn(stacked, bn_params, eps=BN_EPS):
    """Apply the 5 eval-mode BatchNorm1d bottlenecks to a (5, B, D) stack in one kernel call."""
    g = jnp.stack([p[0] for p in bn_params])
    b = jnp.stack([p[1] for p in bn_params])
    m = jnp.stack([p[2] for p in bn_params])
    v = jnp.stack([p[3] for p in bn_params])
    scale = g * jax.lax.rsqrt(v + eps)              # (5, D)
    shift = b - m * scale
    G, D = scale.shape
    return affine_grouped_pallas(stacked, scale.reshape(G, 1, D), shift.reshape(G, 1, D))


def base_forward(x_img, cam_label, P, cfg):
    """ViT backbone (local_feature=True): patch embed + cls + pos + SIE, all blocks but last."""
    B = x_img.shape[0]
    D = cfg['in_planes']
    patches = patch_embed(x_img, P['patch_w'], P['patch_b'], cfg['patch'])    # (B,N,D)
    cls = jnp.broadcast_to(P['cls_token'], (B, 1, D))
    x = jnp.concatenate([cls, patches], axis=1)                               # (B,N+1,D)
    sie = P['sie_embed'][cam_label]                                           # (B,1,D)
    x = x + P['pos_embed'] + cfg['sie_xishu'] * sie
    # pos_drop / drop_path: identity in eval mode
    for blk in P['base_blocks']:
        x = block_forward(x, blk, cfg['heads'])
    return x


def forward(P, x_img, cam_label, cfg, training=False, neck_feat='after'):
    heads = cfg['heads']
    features = base_forward(x_img, cam_label, P, cfg)                         # (B, L, D)
    B, L, D = features.shape

    # global branch (b1) — block + fused final LayerNorm
    b1_feat = b_branch(features, P['b_block'], P['norm_g'], P['norm_b'], heads)
    global_feat = b1_feat[:, 0]

    feature_length = L - 1
    patch_length = feature_length // cfg['divide_length']
    token = features[:, 0:1]

    if cfg['rearrange']:
        x = shuffle_unit(features, cfg['shift_num'], cfg['shuffle_groups'])
    else:
        x = features[:, 1:]

    # 4 local branches share the same b2 weights -> run as ONE stacked (4B, pl+1, D) call.
    locals_in = jnp.concatenate(
        [jnp.concatenate([token, x[:, patch_length * i: patch_length * (i + 1)]], axis=1)
         for i in range(4)], axis=0)
    locals_out = b_branch(locals_in, P['b_block'], P['norm_g'], P['norm_b'], heads)
    local_cls = locals_out[:, 0].reshape(4, B, D)
    l1, l2, l3, l4 = local_cls[0], local_cls[1], local_cls[2], local_cls[3]

    # 5 bottleneck BatchNorms batched into one grouped-affine call (no repeat broadcast).
    stacked = jnp.stack([global_feat, l1, l2, l3, l4], axis=0)                # (5, B, D)
    stacked_bn = bottlenecks_bn(stacked, P['bn'])                             # (5, B, D)
    feat = stacked_bn[0]
    l1_bn, l2_bn, l3_bn, l4_bn = stacked_bn[1], stacked_bn[2], stacked_bn[3], stacked_bn[4]

    if training:
        w5 = jnp.stack(P['cls_w'])                                            # (5, D, C)
        scores = classifier_batched_pallas(stacked_bn, w5)                    # (5, B, C)
        return ([scores[0], scores[1], scores[2], scores[3], scores[4]],
                [global_feat, l1, l2, l3, l4])
    elif neck_feat == 'after':
        return jnp.concatenate([feat, l1_bn / 4, l2_bn / 4, l3_bn / 4, l4_bn / 4], axis=1)
    else:
        return jnp.concatenate([global_feat, l1 / 4, l2 / 4, l3 / 4, l4 / 4], axis=1)


# ------------------------------------------------------------------ deterministic parameter init

def init_block(key, D, H, s=0.02):
    ks = jax.random.split(key, 4)
    return dict(
        ln1_g=jnp.ones((D,), jnp.float32), ln1_b=jnp.zeros((D,), jnp.float32),
        qkv_w=(s * jax.random.normal(ks[0], (D, 3 * D), jnp.float32)).astype(MXU_DTYPE),
        qkv_b=jnp.zeros((3 * D,), jnp.float32),
        proj_w=(s * jax.random.normal(ks[1], (D, D), jnp.float32)).astype(MXU_DTYPE),
        proj_b=jnp.zeros((D,), jnp.float32),
        ln2_g=jnp.ones((D,), jnp.float32), ln2_b=jnp.zeros((D,), jnp.float32),
        fc1_w=(s * jax.random.normal(ks[2], (D, H), jnp.float32)).astype(MXU_DTYPE),
        fc1_b=jnp.zeros((H,), jnp.float32),
        fc2_w=(s * jax.random.normal(ks[3], (H, D), jnp.float32)).astype(MXU_DTYPE),
        fc2_b=jnp.zeros((D,), jnp.float32),
    )


def init_params(key, cfg):
    D = cfg['in_planes']
    C, Psz = cfg['in_ch'], cfg['patch']
    N = (cfg['img'] // Psz) ** 2
    ks = jax.random.split(key, 16)
    # BN (weights_init_kaiming): gamma=1, beta=0, running mean=0, var=1
    bn = [(jnp.ones((D,), jnp.float32), jnp.zeros((D,), jnp.float32),
           jnp.zeros((D,), jnp.float32), jnp.ones((D,), jnp.float32)) for _ in range(5)]
    # classifiers (weights_init_classifier): normal(std=0.001), no bias; stored (D, num_classes)
    cls_w = [(0.001 * jax.random.normal(ks[10 + i], (D, cfg['num_classes']), jnp.float32)
              ).astype(MXU_DTYPE) for i in range(5)]
    return dict(
        # patch-embed conv weight stored pre-flattened as an im2col matrix (C*P*P, D)
        patch_w=(0.02 * jax.random.normal(ks[0], (C * Psz * Psz, D), jnp.float32)).astype(MXU_DTYPE),
        patch_b=jnp.zeros((D,), jnp.float32),
        cls_token=0.02 * jax.random.normal(ks[1], (1, 1, D), jnp.float32),
        pos_embed=0.02 * jax.random.normal(ks[2], (1, N + 1, D), jnp.float32),
        sie_embed=0.02 * jax.random.normal(ks[3], (cfg['camera_num'], 1, D), jnp.float32),
        base_blocks=[init_block(ks[4], D, cfg['mlp_hidden'])],     # blocks[:-1]
        b_block=init_block(ks[5], D, cfg['mlp_hidden']),           # last block (b1/b2 deepcopy share init)
        norm_g=jnp.ones((D,), jnp.float32), norm_b=jnp.zeros((D,), jnp.float32),
        bn=bn, cls_w=cls_w,
    )


# ------------------------------------------------------------------ main

if __name__ == "__main__":
    cfg = dict(
        in_planes=32, heads=4, mlp_hidden=64,
        in_ch=3, img=16, patch=8,              # -> 4 patches + cls = 5 tokens
        num_classes=10, camera_num=2, sie_xishu=1.5,
        shift_num=2, shuffle_groups=2, divide_length=4, rearrange=True,
    )
    key = jax.random.PRNGKey(0)
    k_p, k_x = jax.random.split(key)
    params = init_params(k_p, cfg)

    x = jax.random.normal(k_x, (2, cfg['in_ch'], cfg['img'], cfg['img']), jnp.float32)
    cam_label = jnp.array([0, 1], jnp.int32)

    # eval path (neck_feat == 'after'): concat([feat, local_bn_i / 4, ...]) -> (B, 5*D)
    out_eval = forward(params, x, cam_label, cfg, training=False, neck_feat='after')
    jax.block_until_ready(out_eval)
    assert out_eval.shape == (2, 5 * cfg['in_planes'])

    # training path: ([5 x cls_scores], [5 x raw features])
    scores, feats = forward(params, x, cam_label, cfg, training=True)
    jax.block_until_ready(scores)
    assert scores[0].shape == (2, cfg['num_classes']) and feats[0].shape == (2, cfg['in_planes'])

    # TODO(synk): pretrained-checkpoint loading (load_param) intentionally not reproduced.
    # TODO(synk): BatchNorm1d uses running (eval) statistics; training-mode batch stats,
    #             dropout and drop_path are not reproduced (identity in eval).
    print("KERNEL_OK")
</pallas_src>

<mosaic_0001>
module attributes {stable_mosaic.version = 11 : i64} {
  func.func @kernel(%arg0: i32, %arg1: i32, %arg2: i32, %arg3: memref<8x192xbf16, #tpu.memory_space<vmem>>, %arg4: memref<192x32xbf16, #tpu.memory_space<vmem>>, %arg5: memref<1x32xf32, #tpu.memory_space<vmem>>, %arg6: memref<8x32xf32, #tpu.memory_space<vmem>>, %arg7: memref<8x32xf32, #tpu.memory_space<vmem>>) attributes {dimension_semantics = [#tpu.dimension_semantics<parallel>, #tpu.dimension_semantics<parallel>, #tpu.dimension_semantics<arbitrary>], iteration_bounds = array<i64: 1, 1, 1>, scalar_prefetch = 0 : i64, scratch_operands = 1 : i64, tpu.core_type = #tpu.core_type<tc>, window_params = [{transform_indices = @transform_0, window_bounds = array<i64: 8, 192>}, {transform_indices = @transform_1, window_bounds = array<i64: 192, 32>}, {transform_indices = @transform_2, window_bounds = array<i64: 1, 32>}, {transform_indices = @transform_3, window_bounds = array<i64: 8, 32>}]} {
    %c0_i32 = arith.constant 0 : i32
    %0 = arith.cmpi eq, %arg2, %c0_i32 : i32
    %1 = arith.extui %0 : i1 to i32
    %c0_i32_0 = arith.constant 0 : i32
    %2 = arith.cmpi ne, %1, %c0_i32_0 : i32
    scf.if %2 {
      %cst_10 = arith.constant 0.000000e+00 : f32
      %12 = vector.broadcast %cst_10 : f32 to vector<8x32xf32>
      %c0_11 = arith.constant 0 : index
      %c0_12 = arith.constant 0 : index
      %13 = vector.load %arg7[%c0_11, %c0_12] : memref<8x32xf32, #tpu.memory_space<vmem>>, vector<8x32xf32>
      tpu.vector_store %arg7[%c0_11, %c0_12], %12 {strides = array<i32>} : memref<8x32xf32, #tpu.memory_space<vmem>>, vector<8x32xf32>,
    } else {
    }
    %c0 = arith.constant 0 : index
    %c0_1 = arith.constant 0 : index
    %3 = vector.load %arg7[%c0, %c0_1] : memref<8x32xf32, #tpu.memory_space<vmem>>, vector<8x32xf32>
    %c0_2 = arith.constant 0 : index
    %c0_3 = arith.constant 0 : index
    %4 = vector.load %arg3[%c0_2, %c0_3] : memref<8x192xbf16, #tpu.memory_space<vmem>>, vector<8x192xbf16>
    %c0_4 = arith.constant 0 : index
    %c0_5 = arith.constant 0 : index
    %5 = vector.load %arg4[%c0_4, %c0_5] : memref<192x32xbf16, #tpu.memory_space<vmem>>, vector<192x32xbf16>
    %cst = arith.constant dense<0.000000e+00> : vector<8x32xf32>
    %6 = tpu.matmul %4, %5, %cst {dimension_numbers = #tpu.dot_dimension_numbers<[1], [0], [0], [1], [0, 0, 1, 1], [], []>} : vector<8x192xbf16>, vector<192x32xbf16>, vector<8x32xf32> -> vector<8x32xf32>
    %7 = arith.addf %3, %6 : vector<8x32xf32>
    %c0_6 = arith.constant 0 : index
    %c0_7 = arith.constant 0 : index
    %8 = vector.load %arg7[%c0_6, %c0_7] : memref<8x32xf32, #tpu.memory_space<vmem>>, vector<8x32xf32>
    tpu.vector_store %arg7[%c0_6, %c0_7], %7 {strides = array<i32>} : memref<8x32xf32, #tpu.memory_space<vmem>>, vector<8x32xf32>,
    %c0_i32_8 = arith.constant 0 : i32
    %9 = arith.cmpi eq, %arg2, %c0_i32_8 : i32
    %10 = arith.extui %9 : i1 to i32
    %c0_i32_9 = arith.constant 0 : i32
    %11 = arith.cmpi ne, %10, %c0_i32_9 : i32
    scf.if %11 {
      %c0_10 = arith.constant 0 : index
      %c0_11 = arith.constant 0 : index
      %12 = vector.load %arg7[%c0_10, %c0_11] : memref<8x32xf32, #tpu.memory_space<vmem>>, vector<8x32xf32>
      %c0_12 = arith.constant 0 : index
      %c0_13 = arith.constant 0 : index
      %13 = vector.load %arg5[%c0_12, %c0_13] : memref<1x32xf32, #tpu.memory_space<vmem>>, vector<1x32xf32>
      %14 = vector.broadcast %13 : vector<1x32xf32> to vector<8x32xf32>
      %15 = arith.addf %12, %14 : vector<8x32xf32>
      %c0_14 = arith.constant 0 : index
      %c0_15 = arith.constant 0 : index
      %16 = vector.load %arg6[%c0_14, %c0_15] : memref<8x32xf32, #tpu.memory_space<vmem>>, vector<8x32xf32>
      tpu.vector_store %arg6[%c0_14, %c0_15], %15 {strides = array<i32>} : memref<8x32xf32, #tpu.memory_space<vmem>>, vector<8x32xf32>,
    } else {
    }
    return
  }
  func.func @transform_0(%arg0: i32, %arg1: i32, %arg2: i32) -> (i32, i32) {
    %c0_i32 = arith.constant 0 : i32
    return %arg0, %arg2 : i32, i32
  }
  func.func @transform_1(%arg0: i32, %arg1: i32, %arg2: i32) -> (i32, i32) {
    %c0_i32 = arith.constant 0 : i32
    return %arg2, %arg1 : i32, i32
  }
  func.func @transform_2(%arg0: i32, %arg1: i32, %arg2: i32) -> (i32, i32) {
    %c0_i32 = arith.constant 0 : i32
    %c0_i32_0 = arith.constant 0 : i32
    return %c0_i32, %arg1 : i32, i32
  }
  func.func @transform_3(%arg0: i32, %arg1: i32, %arg2: i32) -> (i32, i32) {
    %c0_i32 = arith.constant 0 : i32
    return %arg0, %arg1 : i32, i32
  }
}

</mosaic_0001>

<llo_original>
// kernel: tpu_custom_call.1
$region0: #{tpu_custom_call.1}
  #allocation0 [shape = 'u32[]', space=smem, size = 0x4, offset = 0x4, fixed_abs, tag = 'smem constant byte address 0x4 - core index']
  #allocation1 [shape = 'u32[144,128]{1,0:T(1,128)}', space=vmem, size = 0x12000, scoped, tag = 'internal scratch']
  #allocation2 [shape = 'f32[8,32]{1,0:T(8,128)}', space=vmem, size = 0x1000, scoped, tag = 'scratch operand']
  %s0 = inlined_call_operand.vmem [shape: bf16[8,192], index: 0, kind: input, shape index: {}]
  %s1 = inlined_call_operand.vmem [shape: bf16[192,32], index: 1, kind: input, shape index: {}]
  %s2 = inlined_call_operand.vmem [shape: f32[1,32], index: 2, kind: input, shape index: {}]
  %s3 = inlined_call_operand.hbm [shape: f32[8,32], index: 3, kind: output, shape index: {}]
  %s4 = sld [smem:[#allocation0]]
  $region30: #{tpu_custom_call.1} parent=0
    _
  %s6 = ssub.s32 1, %s4
  %s7 = scalar_select 0, %s6, %s4
  $region1: #{tpu_custom_call.1} parent=0
    #allocation3 [shape = 'u8[4096]{0}', space=vmem, size = 0x1000, scoped, tag = 'output window, operand 0, single buffered']
    #allocation4 [shape = 's32[1]{0}', space=sflag, size = 0x4, scoped, tag = 'scoped memory for tpu_custom_call.1']
    %8 = vsyncpa [#allocation4], 0
    // Predicated region
    $region2: #{tpu_custom_call.1} parent=1 // pred_check
      _
    $region3: #{tpu_custom_call.1} parent=1 // pred_check_branch
      %10 = sbr.rel (0) target = $region5
    $region4: #{tpu_custom_call.1} parent=1 // pred_region
      _
    $region5: #{tpu_custom_call.1} parent=1 // pred_fallthru
      _
    // Predicated region
    $region6: #{tpu_custom_call.1} parent=1 // pred_check
      _
    $region7: #{tpu_custom_call.1} parent=1 // pred_check_branch
      %12 = sbr.rel (0) target = $region9
    $region8: #{tpu_custom_call.1} parent=1 // pred_region
      _
    $region9: #{tpu_custom_call.1} parent=1 // pred_fallthru
      _
    // Predicated region
    $region10: #{tpu_custom_call.1} parent=1 // pred_check
      _
    $region11: #{tpu_custom_call.1} parent=1 // pred_check_branch
      %14 = sbr.rel (0) target = $region13
    $region12: #{tpu_custom_call.1} parent=1 // pred_region
      _
    $region13: #{tpu_custom_call.1} parent=1 // pred_fallthru
      _
    %p16 = scmp.eq.s32.totalorder 0, 0
    // Predicated region
    $region14: #{tpu_custom_call.1} parent=1 // pred_check
      %p17 = pneg %p16
    $region15: #{tpu_custom_call.1} parent=1 // pred_check_branch
      %19 = sbr.rel (%p17) target = $region17
    $region16: #{tpu_custom_call.1} parent=1 // pred_region
      %vm20 = vcmask 261120
      %21 = vst.msk [vmem:[#allocation2] sm:$0xff] %vm20, 0.0
    $region17: #{tpu_custom_call.1} parent=1 // pred_fallthru
      _
    %v22 = vld [vmem:[#allocation2] sm:$0xff]
    %v23 = vld [vmem:[%s0] sm:$0xff]
    %v24 = vld [vmem:[%s1] sm:$0xf]
    %v25 = vld [vmem:[%s1 + $0x4] sm:$0xf]
    %v26 = vld [vmem:[%s1 + $0x8] sm:$0xf]
    %v27 = vld [vmem:[%s1 + $0xc] sm:$0xf]
    %v28 = vld [vmem:[%s1 + $0x10] sm:$0xf]
    %v29 = vld [vmem:[%s1 + $0x14] sm:$0xf]
    %v30 = vld [vmem:[%s1 + $0x18] sm:$0xf]
    %v31 = vld [vmem:[%s1 + $0x1c] sm:$0xf]
    %v32 = vld [vmem:[%s1 + $0x20] sm:$0xf]
    %v33 = vld [vmem:[%s1 + $0x24] sm:$0xf]
    %v34 = vld [vmem:[%s1 + $0x28] sm:$0xf]
    %v35 = vld [vmem:[%s1 + $0x2c] sm:$0xf]
    %v36 = vld [vmem:[%s1 + $0x30] sm:$0xf]
    %v37 = vld [vmem:[%s1 + $0x34] sm:$0xf]
    %v38 = vld [vmem:[%s1 + $0x38] sm:$0xf]
    %v39 = vld [vmem:[%s1 + $0x3c] sm:$0xf]
    %v40 = vld [vmem:[%s1 + $0x40] sm:$0xf]
    %v41 = vld [vmem:[%s1 + $0x44] sm:$0xf]
    %v42 = vld [vmem:[%s1 + $0x48] sm:$0xf]
    %v43 = vld [vmem:[%s1 + $0x4c] sm:$0xf]
    %v44 = vld [vmem:[%s1 + $0x50] sm:$0xf]
    %v45 = vld [vmem:[%s1 + $0x54] sm:$0xf]
    %v46 = vld [vmem:[%s1 + $0x58] sm:$0xf]
    %v47 = vld [vmem:[%s1 + $0x5c] sm:$0xf]
    %v49 = vunpack.c.l.b16 %v23
    %v50 = vunpack.c.h.b16 %v23
    %v51 = vpack.c.b16 %v49, %v49
    %v52 = vpack.c.b16 %v50, %v50
    %v78 = vunpack.c.l.b16 %v24
    %v79 = vunpack.c.l.b16 %v25
    %v80 = vunpack.c.l.b16 %v26
    %v81 = vunpack.c.l.b16 %v27
    %v82 = vunpack.c.l.b16 %v28
    %v83 = vunpack.c.l.b16 %v29
    %v84 = vunpack.c.l.b16 %v30
    %v85 = vunpack.c.l.b16 %v31
    %v86 = vunpack.c.l.b16 %v32
    %v87 = vunpack.c.l.b16 %v33
    %v88 = vunpack.c.l.b16 %v34
    %v89 = vunpack.c.l.b16 %v35
    %v90 = vunpack.c.l.b16 %v36
    %v91 = vunpack.c.l.b16 %v37
    %v92 = vunpack.c.l.b16 %v38
    %v93 = vunpack.c.l.b16 %v39
    %v94 = vunpack.c.l.b16 %v40
    %v95 = vunpack.c.l.b16 %v41
    %v96 = vunpack.c.l.b16 %v42
    %v97 = vunpack.c.l.b16 %v43
    %v98 = vunpack.c.l.b16 %v44
    %v99 = vunpack.c.l.b16 %v45
    %v100 = vunpack.c.l.b16 %v46
    %v101 = vunpack.c.l.b16 %v47
    %v102 = vpack.c.b16 %v79, %v78
    %v103 = vpack.c.b16 %v81, %v80
    %v104 = vpack.c.b16 %v83, %v82
    %v105 = vpack.c.b16 %v85, %v84
    %v106 = vpack.c.b16 %v87, %v86
    %v107 = vpack.c.b16 %v89, %v88
    %v108 = vpack.c.b16 %v91, %v90
    %v109 = vpack.c.b16 %v93, %v92
    %v110 = vpack.c.b16 %v95, %v94
    %v111 = vpack.c.b16 %v97, %v96
    %v112 = vpack.c.b16 %v99, %v98
    %v113 = vpack.c.b16 %v101, %v100
    %vm126 = vcmask 523264
    %v128 = vsel %vm126, %v52, 0
    %130 = vmatprep.subr.bf16.mxu0 0
    %131 = vmatpush1.bf16.msra.mxu0 %v102
    %132 = vmatprep.subr.bf16.mxu0 0
    %133 = vmatpush1.bf16.msra.mxu0 %v103
    %134 = vmatprep.subr.bf16.mxu0 0
    %135 = vmatpush1.bf16.msra.mxu0 %v104
    %136 = vmatprep.subr.bf16.mxu0 0
    %137 = vmatpush1.bf16.msra.mxu0 %v105
    %138 = vmatprep.subr.bf16.mxu0 0
    %139 = vmatpush1.bf16.msra.mxu0 %v106
    %140 = vmatprep.subr.bf16.mxu0 0
    %141 = vmatpush1.bf16.msra.mxu0 %v107
    %142 = vmatprep.subr.bf16.mxu0 0
    %143 = vmatpush1.bf16.msra.mxu0 %v108
    %144 = vmatprep.subr.bf16.mxu0 0
    %145 = vmatpush1.bf16.msra.mxu0 %v109
    %146 = vmatprep.subr.bf16.mxu0 0
    %147 = vmatpush1.bf16.msra.mxu0 %v110
    %148 = vmatprep.subr.bf16.mxu0 0
    %149 = vmatpush1.bf16.msra.mxu0 %v111
    %150 = vmatprep.subr.bf16.mxu0 0
    %151 = vmatpush1.bf16.msra.mxu0 %v112
    %152 = vmatprep.subr.bf16.mxu0 0
    %153 = vmatpush1.bf16.msra.mxu0 %v113
    %154 = vmatprep.subr.bf16.mxu0 0
    %155 = vmatpush1.bf16.msra.mxu0 0
    %156 = vmatprep.subr.bf16.mxu0 0
    %157 = vmatpush1.bf16.msra.mxu0 0
    %158 = vmatprep.subr.bf16.mxu0 0
    %159 = vmatpush1.bf16.msra.mxu0 0
    %160 = vmatprep.subr.bf16.mxu0 0
    %161 = vmatpush1.bf16.msra.mxu0 0
    %162 = vmatprep.mubr.bf16.mxu0 %v128
    %163 = vmatmul.mubr.bf16.gmra.mrb[0].mxu0 %v51
    %v164 = vpop.f32.mrb[0].mxu0
    %v165 = vadd.f32 0.0, %v164
    %v166 = vpop.f32.mrb[0].mxu0
    %v167 = vpop.f32.mrb[0].mxu0
    %v168 = vpop.f32.mrb[0].mxu0
    %169 = vdwg.mxu0
    %v170 = vadd.f32 %v22, %v165
    %vm171 = vcmask 261120
    %172 = vst.msk [vmem:[#allocation2] sm:$0xff] %vm171, %v170
    // Predicated region
    $region18: #{tpu_custom_call.1} parent=1 // pred_check
      %p173 = pneg %p16
    $region19: #{tpu_custom_call.1} parent=1 // pred_check_branch
      %175 = sbr.rel (%p173) target = $region21
    $region20: #{tpu_custom_call.1} parent=1 // pred_region
      %v176 = vld [vmem:[#allocation2] sm:$0xff]
      %v177 = vld [vmem:[%s2] sm:$0x1]
      %v179 = vlaneseq
      %v180 = vshrl.u32 %v179, 7
      %v181 = vsub.s32 0, %v180
      %v182 = vrot.slane %v177, %v181
      %v184 = vadd.f32 %v176, %v182
      %185 = vst.msk [vmem:[#allocation3] sm:$0xff] %vm171, %v184
    $region21: #{tpu_custom_call.1} parent=1 // pred_fallthru
      _
    // Predicated region
    $region22: #{tpu_custom_call.1} parent=1 // pred_check
      _
    $region23: #{tpu_custom_call.1} parent=1 // pred_check_branch
      %187 = sbr.rel (0) target = $region25
    $region24: #{tpu_custom_call.1} parent=1 // pred_region
      %s189 = ssub.s32 128, 128
      %190 = vsyncadd [#allocation4], %s189
      %s192 = sshll.u32 [#allocation3], 4
      %s193 = int_to_ptr.vmem [resolvable:$true] %s192
      %195 = dma.vmem_to_hbm [thread:$0]  %s193, 128, %s3, [#allocation4]
    $region25: #{tpu_custom_call.1} parent=1 // pred_fallthru
      _
    // Predicated region
    $region26: #{tpu_custom_call.1} parent=1 // pred_check
      _
    $region27: #{tpu_custom_call.1} parent=1 // pred_check_branch
      %197 = sbr.rel (0) target = $region29
    $region28: #{tpu_custom_call.1} parent=1 // pred_region
      %198 = dma.done [#allocation4], 128
    $region29: #{tpu_custom_call.1} parent=1 // pred_fallthru
      _
    %199 = vsyncpa [#allocation4], 1

</llo_original>
